<compile_context>
chip_gen: v5e
topology: v5e:2x2
jax: 0.10.0
libtpu: 0.0.40
codegen_flags: <defaults>
</compile_context>

<pallas_src>
import jax
import jax.numpy as jnp
from jax.experimental import pallas as pl
from jax.experimental.pallas import tpu as pltpu


# ---------------------------------------------------------------------------
# Kernel
# ---------------------------------------------------------------------------
def _fc_kernel(x_ref, w_ref, b_ref, o_ref, acc_ref):
    """One (tm, tn) output tile, accumulated across the K grid axis.

    x_ref:   (tm, tk)  activation tile (compute dtype, bf16 by default)
    w_ref:   (tk, tn)  weight tile, already relaid out to (n_in, n_out) so the
                       contraction is NN -> no per-tile XLU transposes.
    b_ref:   (1, tn)   bias row (f32)
    o_ref:   (tm, tn)  output tile
    acc_ref: (tm, tn)  f32 VMEM accumulator, resident across the K axis
    """
    k = pl.program_id(2)

    @pl.when(k == 0)
    def _init():
        acc_ref[...] = jnp.zeros_like(acc_ref)

    acc_ref[...] += jnp.dot(x_ref[...], w_ref[...],
                            preferred_element_type=jnp.float32)

    @pl.when(k == pl.num_programs(2) - 1)
    def _finalize():
        o_ref[...] = (acc_ref[...] + b_ref[...]).astype(o_ref.dtype)


# ---------------------------------------------------------------------------
# Tile selection helpers
# ---------------------------------------------------------------------------
def _device_kind():
    try:
        return jax.devices()[0].device_kind.lower()
    except Exception:
        return ""


def _tile_presets(kind):
    """(tm, tn, tk, vmem_limit_bytes, multi_core) per TPU generation."""
    if "v5e" in kind or "v5 lite" in kind or "v5lite" in kind:
        # 128 MiB VMEM, ~820 GB/s HBM, 4x128^2 MXU: square-ish tiles suffice.
        return 512, 512, 1024, 100 * 1024 * 1024, False
    if "v6" in kind or "trillium" in kind:
        # 128 MiB VMEM, ridge ~650 FLOP/byte: big tm*tn to clear it (~30 MiB WS).
        return 2048, 1024, 512, 100 * 1024 * 1024, False
    if "v7" in kind:
        # 64 MiB VMEM / TC, higher HBM BW -> lower ridge; 2 TCs per chip.
        return 1024, 512, 512, 56 * 1024 * 1024, True
    # Unknown chip: assume the tighter (v7x-style) VMEM budget.
    return 1024, 512, 512, 56 * 1024 * 1024, True


def _round_up(x, m):
    return ((x + m - 1) // m) * m


def _pick_tile(dim, desired, align):
    """Full extent if it fits (always legal), else largest align-multiple <= desired."""
    if dim <= desired:
        return dim
    return max(align, (desired // align) * align)


# ---------------------------------------------------------------------------
# Parameter prep (one-time relayout) + forward
# ---------------------------------------------------------------------------
def prepare_fcnet_params(weight, bias, *, compute_dtype=jnp.bfloat16):
    """One-time relayout of nn.Linear params for the Pallas kernel.

    weight: (n_out, n_in) PyTorch layout -> (n_in, n_out) in `compute_dtype`
            so the kernel runs an NN contraction (no per-tile transposes).
    bias:   (n_out,) -> (1, n_out) f32 row.
    """
    w_t = jnp.asarray(weight).T.astype(compute_dtype)
    b2 = jnp.asarray(bias).astype(jnp.float32).reshape(1, -1)
    return w_t, b2


def fcnet_forward_prepared(x, w_t, b2, *, compute_dtype=jnp.bfloat16,
                           out_dtype=None, tm=None, tn=None, tk=None):
    """y = x @ W.T + b (torch.nn.Linear semantics), W pre-relaid to (n_in, n_out)."""
    B, n_in = x.shape
    n_in_w, n_out = w_t.shape
    assert n_in_w == n_in, (w_t.shape, x.shape)
    assert b2.shape == (1, n_out)

    if out_dtype is None:
        out_dtype = x.dtype
    x = x.astype(compute_dtype)        # bf16 MXU path; accumulation stays f32
    w_t = w_t.astype(compute_dtype)

    kind = _device_kind()
    tm_d, tn_d, tk_d, vmem_limit, multi_core = _tile_presets(kind)

    # Small-batch (inference-like) regime: the accumulator is tiny, so widen the
    # weight-streaming tiles to amortize per-grid-step overhead / DMA setup.
    if B <= 256:
        tn_d = max(tn_d, 2048)
        tk_d = max(tk_d, 1024)
    if tm is not None:
        tm_d = tm
    if tn is not None:
        tn_d = tn
    if tk is not None:
        tk_d = tk

    itemsize = jnp.dtype(compute_dtype).itemsize
    sub_align = 8 * max(1, 4 // itemsize)      # 8 f32, 16 bf16, 32 int8/fp8

    tm = _pick_tile(B, tm_d, sub_align)
    tn = _pick_tile(n_out, tn_d, 128)

    # K tile: either cover all of n_in (always legal) or a 128-multiple with the
    # K extent zero-padded to a tk multiple (zeros are exact for accumulation).
    if n_in <= tk_d:
        tk = n_in
        n_in_pad = n_in
    else:
        tk = max(128, (tk_d // 128) * 128)
        n_in_pad = _round_up(n_in, tk)
    if n_in_pad != n_in:
        pad = n_in_pad - n_in
        x = jnp.pad(x, ((0, 0), (0, pad)))
        w_t = jnp.pad(w_t, ((0, pad), (0, 0)))

    # Multi-TensorCore chips (v7x): make sure at least one parallel grid axis
    # exposes >= 2 blocks so megacore sharding has something to split.
    if multi_core and pl.cdiv(B, tm) == 1 and pl.cdiv(n_out, tn) == 1:
        if tn >= 256 and tn % 256 == 0:
            tn //= 2
        elif tm >= 2 * sub_align and (tm // 2) % sub_align == 0:
            tm //= 2

    grid = (pl.cdiv(B, tm), pl.cdiv(n_out, tn), n_in_pad // tk)

    x_bytes = B * n_in_pad * itemsize
    w_bytes = n_in_pad * n_out * itemsize
    out_bytes = B * n_out * jnp.dtype(out_dtype).itemsize
    cost = pl.CostEstimate(
        flops=2 * B * n_in_pad * n_out,
        transcendentals=0,
        # Account for re-streaming of W across M blocks and x across N blocks.
        bytes_accessed=(w_bytes * grid[0] + x_bytes * grid[1]
                        + int(b2.size) * 4 + out_bytes),
    )

    return pl.pallas_call(
        _fc_kernel,
        out_shape=jax.ShapeDtypeStruct((B, n_out), out_dtype),
        grid_spec=pltpu.PrefetchScalarGridSpec(
            num_scalar_prefetch=0,
            grid=grid,
            in_specs=[
                pl.BlockSpec((tm, tk), lambda i, j, k: (i, k)),   # x tile
                pl.BlockSpec((tk, tn), lambda i, j, k: (k, j)),   # W (n_in, n_out) tile
                pl.BlockSpec((1, tn), lambda i, j, k: (0, j)),    # bias row
            ],
            out_specs=pl.BlockSpec((tm, tn), lambda i, j, k: (i, j)),
            scratch_shapes=[pltpu.VMEM((tm, tn), jnp.float32)],
        ),
        compiler_params=pltpu.CompilerParams(
            dimension_semantics=("parallel", "parallel", "arbitrary"),
            vmem_limit_bytes=vmem_limit,
        ),
        cost_estimate=cost,
    )(x, w_t, b2)


def fcnet_forward(x, weight, bias, *, compute_dtype=jnp.bfloat16, **kw):
    """Convenience wrapper taking the PyTorch-layout weight (n_out, n_in).

    For repeated calls, run prepare_fcnet_params() once and reuse
    fcnet_forward_prepared() so the weight relayout/cast is amortized.
    """
    w_t, b2 = prepare_fcnet_params(weight, bias, compute_dtype=compute_dtype)
    return fcnet_forward_prepared(x, w_t, b2, compute_dtype=compute_dtype, **kw)


# ---------------------------------------------------------------------------
# Demo / correctness check
# ---------------------------------------------------------------------------
if __name__ == "__main__":
    key = jax.random.PRNGKey(0)
    kx, kw, kb = jax.random.split(key, 3)

    # Small shapes consistent with FCNet; n_out = 128 keeps the output lane-dense.
    B, n_in, n_out = 16, 64, 128

    x = jax.random.normal(kx, (B, n_in), dtype=jnp.float32)
    # Deterministic init mimicking nn.Linear's uniform(-1/sqrt(n_in), 1/sqrt(n_in)).
    bound = 1.0 / (n_in ** 0.5)
    weight = jax.random.uniform(kw, (n_out, n_in), minval=-bound, maxval=bound,
                                dtype=jnp.float32)
    bias = jax.random.uniform(kb, (n_out,), minval=-bound, maxval=bound,
                              dtype=jnp.float32)

    # One-time param prep (weight relayout + bf16 cast), then the kernel call.
    w_t, b2 = prepare_fcnet_params(weight, bias)
    y = jax.block_until_ready(fcnet_forward_prepared(x, w_t, b2))

    # Reference with the same bf16-compute / f32-accumulate recipe.
    y_ref_bf16 = (jnp.dot(x.astype(jnp.bfloat16), weight.T.astype(jnp.bfloat16),
                          preferred_element_type=jnp.float32)
                  + bias).astype(x.dtype)
    # Full-f32 reference (looser tolerance, just a sanity check).
    y_ref_f32 = x @ weight.T + bias

    assert y.shape == (B, n_out)
    assert jnp.allclose(y, y_ref_bf16, atol=1e-2, rtol=1e-2)
    assert jnp.allclose(y, y_ref_f32, atol=5e-2, rtol=5e-2)

    print("KERNEL_OK")
</pallas_src>

<mosaic_0001>
module attributes {stable_mosaic.version = 11 : i64} {
  func.func @_fc_kernel(%arg0: i32, %arg1: i32, %arg2: i32, %arg3: memref<16x64xbf16, #tpu.memory_space<vmem>>, %arg4: memref<64x128xbf16, #tpu.memory_space<vmem>>, %arg5: memref<1x128xf32, #tpu.memory_space<vmem>>, %arg6: memref<16x128xf32, #tpu.memory_space<vmem>>, %arg7: memref<16x128xf32, #tpu.memory_space<vmem>>) attributes {dimension_semantics = [#tpu.dimension_semantics<parallel>, #tpu.dimension_semantics<parallel>, #tpu.dimension_semantics<arbitrary>], iteration_bounds = array<i64: 1, 1, 1>, scalar_prefetch = 0 : i64, scratch_operands = 1 : i64, tpu.core_type = #tpu.core_type<tc>, window_params = [{transform_indices = @transform_0, window_bounds = array<i64: 16, 64>}, {transform_indices = @transform_1, window_bounds = array<i64: 64, 128>}, {transform_indices = @transform_2, window_bounds = array<i64: 1, 128>}, {transform_indices = @transform_3, window_bounds = array<i64: 16, 128>}]} {
    %c0_i32 = arith.constant 0 : i32
    %0 = arith.cmpi eq, %arg2, %c0_i32 : i32
    %1 = arith.extui %0 : i1 to i32
    %c0_i32_0 = arith.constant 0 : i32
    %2 = arith.cmpi ne, %1, %c0_i32_0 : i32
    scf.if %2 {
      %cst_10 = arith.constant 0.000000e+00 : f32
      %12 = vector.broadcast %cst_10 : f32 to vector<16x128xf32>
      %c0_11 = arith.constant 0 : index
      %c0_12 = arith.constant 0 : index
      %13 = vector.load %arg7[%c0_11, %c0_12] : memref<16x128xf32, #tpu.memory_space<vmem>>, vector<16x128xf32>
      tpu.vector_store %arg7[%c0_11, %c0_12], %12 {strides = array<i32>} : memref<16x128xf32, #tpu.memory_space<vmem>>, vector<16x128xf32>,
    } else {
    }
    %c0 = arith.constant 0 : index
    %c0_1 = arith.constant 0 : index
    %3 = vector.load %arg7[%c0, %c0_1] : memref<16x128xf32, #tpu.memory_space<vmem>>, vector<16x128xf32>
    %c0_2 = arith.constant 0 : index
    %c0_3 = arith.constant 0 : index
    %4 = vector.load %arg3[%c0_2, %c0_3] : memref<16x64xbf16, #tpu.memory_space<vmem>>, vector<16x64xbf16>
    %c0_4 = arith.constant 0 : index
    %c0_5 = arith.constant 0 : index
    %5 = vector.load %arg4[%c0_4, %c0_5] : memref<64x128xbf16, #tpu.memory_space<vmem>>, vector<64x128xbf16>
    %cst = arith.constant dense<0.000000e+00> : vector<16x128xf32>
    %6 = tpu.matmul %4, %5, %cst {dimension_numbers = #tpu.dot_dimension_numbers<[1], [0], [0], [1], [0, 0, 1, 1], [], []>} : vector<16x64xbf16>, vector<64x128xbf16>, vector<16x128xf32> -> vector<16x128xf32>
    %7 = arith.addf %3, %6 : vector<16x128xf32>
    %c0_6 = arith.constant 0 : index
    %c0_7 = arith.constant 0 : index
    %8 = vector.load %arg7[%c0_6, %c0_7] : memref<16x128xf32, #tpu.memory_space<vmem>>, vector<16x128xf32>
    tpu.vector_store %arg7[%c0_6, %c0_7], %7 {strides = array<i32>} : memref<16x128xf32, #tpu.memory_space<vmem>>, vector<16x128xf32>,
    %c0_i32_8 = arith.constant 0 : i32
    %9 = arith.cmpi eq, %arg2, %c0_i32_8 : i32
    %10 = arith.extui %9 : i1 to i32
    %c0_i32_9 = arith.constant 0 : i32
    %11 = arith.cmpi ne, %10, %c0_i32_9 : i32
    scf.if %11 {
      %c0_10 = arith.constant 0 : index
      %c0_11 = arith.constant 0 : index
      %12 = vector.load %arg7[%c0_10, %c0_11] : memref<16x128xf32, #tpu.memory_space<vmem>>, vector<16x128xf32>
      %c0_12 = arith.constant 0 : index
      %c0_13 = arith.constant 0 : index
      %13 = vector.load %arg5[%c0_12, %c0_13] : memref<1x128xf32, #tpu.memory_space<vmem>>, vector<1x128xf32>
      %14 = vector.broadcast %13 : vector<1x128xf32> to vector<16x128xf32>
      %15 = arith.addf %12, %14 : vector<16x128xf32>
      %c0_14 = arith.constant 0 : index
      %c0_15 = arith.constant 0 : index
      %16 = vector.load %arg6[%c0_14, %c0_15] : memref<16x128xf32, #tpu.memory_space<vmem>>, vector<16x128xf32>
      tpu.vector_store %arg6[%c0_14, %c0_15], %15 {strides = array<i32>} : memref<16x128xf32, #tpu.memory_space<vmem>>, vector<16x128xf32>,
    } else {
    }
    return
  }
  func.func @transform_0(%arg0: i32, %arg1: i32, %arg2: i32) -> (i32, i32) {
    %c0_i32 = arith.constant 0 : i32
    return %arg0, %arg2 : i32, i32
  }
  func.func @transform_1(%arg0: i32, %arg1: i32, %arg2: i32) -> (i32, i32) {
    %c0_i32 = arith.constant 0 : i32
    return %arg2, %arg1 : i32, i32
  }
  func.func @transform_2(%arg0: i32, %arg1: i32, %arg2: i32) -> (i32, i32) {
    %c0_i32 = arith.constant 0 : i32
    %c0_i32_0 = arith.constant 0 : i32
    return %c0_i32, %arg1 : i32, i32
  }
  func.func @transform_3(%arg0: i32, %arg1: i32, %arg2: i32) -> (i32, i32) {
    %c0_i32 = arith.constant 0 : i32
    return %arg0, %arg1 : i32, i32
  }
}

</mosaic_0001>

<llo_original>
// kernel: tpu_custom_call.1
$region0: #{tpu_custom_call.1}
  #allocation0 [shape = 'u32[]', space=smem, size = 0x4, offset = 0x4, fixed_abs, tag = 'smem constant byte address 0x4 - core index']
  #allocation1 [shape = 'u32[72,128]{1,0:T(1,128)}', space=vmem, size = 0x9000, scoped, tag = 'internal scratch']
  #allocation2 [shape = 'f32[16,128]{1,0:T(8,128)}', space=vmem, size = 0x2000, scoped, tag = 'scratch operand']
  %s0 = inlined_call_operand.hbm [shape: bf16[16,64], index: 0, kind: input, shape index: {}]
  %s1 = inlined_call_operand.hbm [shape: bf16[64,128], index: 1, kind: input, shape index: {}]
  %s2 = inlined_call_operand.vmem [shape: f32[1,128], index: 2, kind: input, shape index: {}]
  %s3 = inlined_call_operand.hbm [shape: f32[16,128], index: 3, kind: output, shape index: {}]
  %s4 = sld [smem:[#allocation0]]
  $region38: #{tpu_custom_call.1} parent=0
    _
  %s6 = ssub.s32 1, %s4
  %s7 = scalar_select 0, %s6, %s4
  $region1: #{tpu_custom_call.1} parent=0
    #allocation3 [shape = 'u8[4096]{0}', space=vmem, size = 0x1000, scoped, tag = 'input window, operand 0, single buffered']
    #allocation4 [shape = 's32[1]{0}', space=sflag, size = 0x4, scoped, tag = 'scoped memory for tpu_custom_call.1']
    #allocation5 [shape = 's32[1]{0}', space=sflag, size = 0x4, scoped, tag = 'scoped memory for tpu_custom_call.1']
    #allocation6 [shape = 'u8[16384]{0}', space=vmem, size = 0x4000, scoped, tag = 'input window, operand 1, single buffered']
    #allocation7 [shape = 's32[1]{0}', space=sflag, size = 0x4, scoped, tag = 'scoped memory for tpu_custom_call.1']
    #allocation8 [shape = 'u8[8192]{0}', space=vmem, size = 0x2000, scoped, tag = 'output window, operand 0, single buffered']
    %8 = vsyncpa [#allocation4], 0
    %9 = vsyncpa [#allocation7], 0
    %10 = vsyncpa [#allocation5], 0
    // Predicated region
    $region2: #{tpu_custom_call.1} parent=1 // pred_check
      _
    $region3: #{tpu_custom_call.1} parent=1 // pred_check_branch
      %12 = sbr.rel (0) target = $region5
    $region4: #{tpu_custom_call.1} parent=1 // pred_region
      %14 = vsyncadd [#allocation4], 0
      %s15 = sshll.u32 %s0, 4
      %s16 = int_to_ptr.hbm [resolvable:$true] %s15
      %s17 = sshll.u32 [#allocation3], 4
      %s18 = int_to_ptr.vmem [resolvable:$true] %s17
      %23 = dma.hbm_to_vmem [thread:$0]  %s16, 128, %s18, [#allocation4], 64, 64, 4
    $region5: #{tpu_custom_call.1} parent=1 // pred_fallthru
      _
    // Predicated region
    $region6: #{tpu_custom_call.1} parent=1 // pred_check
      _
    $region7: #{tpu_custom_call.1} parent=1 // pred_check_branch
      %25 = sbr.rel (0) target = $region9
    $region8: #{tpu_custom_call.1} parent=1 // pred_region
      %27 = vsyncadd [#allocation7], 0
      %s28 = sshll.u32 %s1, 4
      %s29 = int_to_ptr.hbm [resolvable:$true] %s28
      %s30 = sshll.u32 [#allocation6], 4
      %s31 = int_to_ptr.vmem [resolvable:$true] %s30
      %36 = dma.hbm_to_vmem [thread:$0]  %s29, 512, %s31, [#allocation7], 64, 64, 4
    $region9: #{tpu_custom_call.1} parent=1 // pred_fallthru
      _
    // Predicated region
    $region10: #{tpu_custom_call.1} parent=1 // pred_check
      _
    $region11: #{tpu_custom_call.1} parent=1 // pred_check_branch
      %38 = sbr.rel (0) target = $region13
    $region12: #{tpu_custom_call.1} parent=1 // pred_region
      _
    $region13: #{tpu_custom_call.1} parent=1 // pred_fallthru
      _
    // Predicated region
    $region14: #{tpu_custom_call.1} parent=1 // pred_check
      _
    $region15: #{tpu_custom_call.1} parent=1 // pred_check_branch
      %40 = sbr.rel (0) target = $region17
    $region16: #{tpu_custom_call.1} parent=1 // pred_region
      %42 = dma.done [#allocation4], 128
    $region17: #{tpu_custom_call.1} parent=1 // pred_fallthru
      _
    // Predicated region
    $region18: #{tpu_custom_call.1} parent=1 // pred_check
      _
    $region19: #{tpu_custom_call.1} parent=1 // pred_check_branch
      %44 = sbr.rel (0) target = $region21
    $region20: #{tpu_custom_call.1} parent=1 // pred_region
      %46 = dma.done [#allocation7], 512
    $region21: #{tpu_custom_call.1} parent=1 // pred_fallthru
      _
    %p48 = scmp.eq.s32.totalorder 0, 0
    // Predicated region
    $region22: #{tpu_custom_call.1} parent=1 // pred_check
      %p49 = pneg %p48
    $region23: #{tpu_custom_call.1} parent=1 // pred_check_branch
      %51 = sbr.rel (%p49) target = $region25
    $region24: #{tpu_custom_call.1} parent=1 // pred_region
      %52 = vst [vmem:[#allocation2] sm:$0xff] 0.0
      %53 = vst [vmem:[#allocation2 + $0x8] sm:$0xff] 0.0
    $region25: #{tpu_custom_call.1} parent=1 // pred_fallthru
      _
    %v54 = vld [vmem:[#allocation2] sm:$0xff]
    %v55 = vld [vmem:[#allocation2 + $0x8] sm:$0xff]
    %v56 = vld [vmem:[#allocation3] sm:$0xf]
    %v57 = vld [vmem:[#allocation3 + $0x4] sm:$0xf]
    %v58 = vld [vmem:[#allocation6] sm:$0xf]
    %v59 = vld [vmem:[#allocation6 + $0x4] sm:$0xf]
    %v60 = vld [vmem:[#allocation6 + $0x8] sm:$0xf]
    %v61 = vld [vmem:[#allocation6 + $0xc] sm:$0xf]
    %v62 = vld [vmem:[#allocation6 + $0x10] sm:$0xf]
    %v63 = vld [vmem:[#allocation6 + $0x14] sm:$0xf]
    %v64 = vld [vmem:[#allocation6 + $0x18] sm:$0xf]
    %v65 = vld [vmem:[#allocation6 + $0x1c] sm:$0xf]
    %v68 = vunpack.c.l.b16 %v56
    %v69 = vunpack.c.l.b16 %v57
    %v70 = vpack.c.b16 %v69, %v68
    %v79 = vunpack.c.l.b16 %v58
    %v80 = vunpack.c.l.b16 %v59
    %v81 = vunpack.c.l.b16 %v60
    %v82 = vunpack.c.l.b16 %v61
    %v83 = vunpack.c.l.b16 %v62
    %v84 = vunpack.c.l.b16 %v63
    %v85 = vunpack.c.l.b16 %v64
    %v86 = vunpack.c.l.b16 %v65
    %v87 = vpack.c.b16 %v80, %v79
    %v88 = vpack.c.b16 %v82, %v81
    %v89 = vpack.c.b16 %v84, %v83
    %v90 = vpack.c.b16 %v86, %v85
    %vm95 = vcmask 523264
    %v97 = vsel %vm95, %v70, 0
    %99 = vmatpush.bf16.msra.mxu0 0
    %100 = vmatpush.bf16.msra.mxu0 0
    %101 = vmatpush.bf16.msra.mxu0 0
    %102 = vmatpush.bf16.msra.mxu0 0
    %103 = vmatpush.bf16.msra.mxu0 %v90
    %104 = vmatpush.bf16.msra.mxu0 %v89
    %105 = vmatpush.bf16.msra.mxu0 %v88
    %106 = vmatpush.bf16.msra.mxu0 %v87
    %107 = vmatmul.bf16.gmra.mxu0 %v97
    %v108 = vpop.f32.mrf.mxu0
    %v109 = vadd.f32 0.0, %v108
    %v110 = vpop.f32.mrf.mxu0
    %v111 = vadd.f32 0.0, %v110
    %112 = vdwg.mxu0
    %v113 = vadd.f32 %v54, %v109
    %v114 = vadd.f32 %v55, %v111
    %115 = vst [vmem:[#allocation2] sm:$0xff] %v113
    %116 = vst [vmem:[#allocation2 + $0x8] sm:$0xff] %v114
    // Predicated region
    $region26: #{tpu_custom_call.1} parent=1 // pred_check
      %p117 = pneg %p48
    $region27: #{tpu_custom_call.1} parent=1 // pred_check_branch
      %119 = sbr.rel (%p117) target = $region29
    $region28: #{tpu_custom_call.1} parent=1 // pred_region
      %v120 = vld [vmem:[#allocation2] sm:$0xff]
      %v121 = vld [vmem:[#allocation2 + $0x8] sm:$0xff]
      %v122 = vld [vmem:[%s2] sm:$0x1]
      %v124 = vperm.slane %v122, 0
      %v126 = vadd.f32 %v120, %v124
      %v127 = vadd.f32 %v121, %v124
      %128 = vst [vmem:[#allocation8] sm:$0xff] %v126
      %129 = vst [vmem:[#allocation8 + $0x8] sm:$0xff] %v127
    $region29: #{tpu_custom_call.1} parent=1 // pred_fallthru
      _
    // Predicated region
    $region30: #{tpu_custom_call.1} parent=1 // pred_check
      _
    $region31: #{tpu_custom_call.1} parent=1 // pred_check_branch
      %131 = sbr.rel (0) target = $region33
    $region32: #{tpu_custom_call.1} parent=1 // pred_region
      %133 = vsyncadd [#allocation5], 0
      %s134 = sshll.u32 [#allocation8], 4
      %s135 = int_to_ptr.vmem [resolvable:$true] %s134
      %s136 = sshll.u32 %s3, 4
      %s137 = int_to_ptr.hbm [resolvable:$true] %s136
      %142 = dma.vmem_to_hbm [thread:$0]  %s135, 256, %s137, [#allocation5], 128, 128, 8
    $region33: #{tpu_custom_call.1} parent=1 // pred_fallthru
      _
    // Predicated region
    $region34: #{tpu_custom_call.1} parent=1 // pred_check
      _
    $region35: #{tpu_custom_call.1} parent=1 // pred_check_branch
      %144 = sbr.rel (0) target = $region37
    $region36: #{tpu_custom_call.1} parent=1 // pred_region
      %146 = dma.done [#allocation5], 256
    $region37: #{tpu_custom_call.1} parent=1 // pred_fallthru
      _
    %147 = vsyncpa [#allocation4], 1
    %148 = vsyncpa [#allocation7], 1
    %149 = vsyncpa [#allocation5], 1

</llo_original>
